<compile_context>
chip_gen: v6e
topology: v6e:2x2x1
jax: 0.10.0
libtpu: 0.0.40
codegen_flags: <defaults>
</compile_context>

<pallas_src>
import functools

import jax
import jax.numpy as jnp
from jax.experimental import pallas as pl
from jax.experimental.pallas import tpu as pltpu


def _round_up(x, m):
    return (x + m - 1) // m * m


def _largest_divisor_leq(n, cap):
    d = max(1, min(n, cap))
    while n % d:
        d -= 1
    return d


def _block_bytes(shape, itemsize):
    """Conservative VMEM footprint of one block (rounded to (16,128) tiles)."""
    if len(shape) == 1:
        return _round_up(shape[0] * itemsize, 512)
    lead = 1
    for d in shape[:-2]:
        lead *= d
    r = _round_up(shape[-2], 16)
    c = _round_up(shape[-1], 128)
    return lead * r * c * itemsize


def _vmem_limit(nbytes):
    # Generous margin over the block arithmetic; capped at v7x physical VMEM.
    return int(min(nbytes + (16 << 20), 64 << 20))


# ---------------------------------------------------------------------------
# Kernel 1 (non-recurrent pre-pass): gx = X @ W_ih^T + (b_ih + b_hh), stored
# in bfloat16.  One big batched matmul per grid step, fully parallel.
# ---------------------------------------------------------------------------
def _input_proj_kernel(x_ref, w_ih_ref, b_ref, gx_ref):
    x = x_ref[...].astype(jnp.bfloat16)
    gx = jnp.dot(x, w_ih_ref[...], preferred_element_type=jnp.float32) + b_ref[...]
    gx_ref[...] = gx.astype(gx_ref.dtype)


def _input_projection(x_flat, w_ih_t, bias, rows_per_chunk):
    """x_flat: (rows, D_in) bf16; w_ih_t: (D_in, 4Hp) bf16; bias: (1, 4Hp) f32.

    Returns gx: (rows, 4Hp) bf16 (input projection + fused bias).
    """
    rows, d_in = x_flat.shape
    gate_dim = w_ih_t.shape[1]
    n_chunks = rows // rows_per_chunk

    vmem = _vmem_limit(
        2 * _block_bytes((rows_per_chunk, d_in), 2)        # x (double-buffered)
        + 2 * _block_bytes((d_in, gate_dim), 2)            # W_ih^T
        + 2 * _block_bytes((1, gate_dim), 4)               # bias
        + 2 * _block_bytes((rows_per_chunk, gate_dim), 2)  # gx out
    )

    return pl.pallas_call(
        _input_proj_kernel,
        out_shape=jax.ShapeDtypeStruct((rows, gate_dim), jnp.bfloat16),
        grid_spec=pltpu.PrefetchScalarGridSpec(
            num_scalar_prefetch=0,
            grid=(n_chunks,),
            in_specs=[
                pl.BlockSpec((rows_per_chunk, d_in), lambda i: (i, 0)),
                pl.BlockSpec((d_in, gate_dim), lambda i: (0, 0)),
                pl.BlockSpec((1, gate_dim), lambda i: (0, 0)),
            ],
            out_specs=pl.BlockSpec((rows_per_chunk, gate_dim), lambda i: (i, 0)),
        ),
        compiler_params=pltpu.CompilerParams(
            dimension_semantics=("parallel",),
            vmem_limit_bytes=vmem),
    )(x_flat, w_ih_t, bias)


# ---------------------------------------------------------------------------
# Kernel 2 (recurrent): per time-chunk, partially-unrolled loop over TB steps.
# Only h_prev @ W_hh^T is on the serial critical path; W_hh^T is DMA'd once
# into a single-buffered VMEM scratch.
# ---------------------------------------------------------------------------
def _lstm_recurrent_kernel(gx_ref, w_hh_hbm, out_ref, hn_ref, cn_ref,
                           w_hh_vmem, h_sc, c_sc, *,
                           hidden_pad, batch_pad, time_block,
                           seq_len, seq_len_pad):
    chunk = pl.program_id(0)
    Hp, Bp = hidden_pad, batch_pad

    @pl.when(chunk == 0)
    def _():
        h_sc[...] = jnp.zeros_like(h_sc)
        c_sc[...] = jnp.zeros_like(c_sc)
        # Grid-invariant operand: load once into a single-buffered VMEM
        # scratch instead of a (default) double-buffered BlockSpec input.
        # Safe because the grid axis is "arbitrary" (serial on one core).
        pltpu.sync_copy(w_hh_hbm, w_hh_vmem)

    w_hh = w_hh_vmem[...]                                 # (Hp, 4Hp) bf16

    def sigmoid(x):
        # One tanh EUP push instead of exp + reciprocal.
        return 0.5 * jnp.tanh(0.5 * x) + 0.5

    needs_mask = seq_len_pad > seq_len
    t0 = chunk * time_block

    def step(j, carry):
        h_prev, c_prev = carry                            # (Bp, Hp) f32
        row = pl.multiple_of(j * Bp, 8)                   # sublane-aligned
        gx = gx_ref[pl.ds(row, Bp), :].astype(jnp.float32)  # (Bp, 4Hp)
        gates = gx + jnp.dot(h_prev.astype(jnp.bfloat16), w_hh,
                             preferred_element_type=jnp.float32)
        # Gate order matches PyTorch: i, f, g, o.  Hp is a multiple of 128,
        # so every slice is vreg lane-aligned.
        i_g = sigmoid(gates[:, 0 * Hp:1 * Hp])
        f_g = sigmoid(gates[:, 1 * Hp:2 * Hp])
        g_g = jnp.tanh(gates[:, 2 * Hp:3 * Hp])
        o_g = sigmoid(gates[:, 3 * Hp:4 * Hp])
        c_new = f_g * c_prev + i_g * g_g
        h_new = o_g * jnp.tanh(c_new)
        if needs_mask:
            # Padded timesteps: freeze the carry so h_n/c_n stay correct.
            valid = (t0 + j) < seq_len
            c_new = jnp.where(valid, c_new, c_prev)
            h_new = jnp.where(valid, h_new, h_prev)
        out_ref[pl.ds(row, Bp), :] = h_new.astype(out_ref.dtype)
        return h_new, c_new

    # Full unroll only for small padded hidden sizes (avoid vreg spills).
    if hidden_pad <= 256:
        unroll = time_block
    elif hidden_pad <= 512:
        unroll = 8
    else:
        unroll = 4
    unroll = max(1, min(unroll, time_block))

    h_fin, c_fin = jax.lax.fori_loop(
        0, time_block, step, (h_sc[...], c_sc[...]), unroll=unroll)

    h_sc[...] = h_fin
    c_sc[...] = c_fin

    # Only the last chunk writes the final states (constant output block index,
    # flushed once at the end of the grid).
    @pl.when(chunk == pl.num_programs(0) - 1)
    def _():
        hn_ref[...] = h_fin
        cn_ref[...] = c_fin


def _run_lstm_layer(x_flat, w_ih_t, w_hh_t, bias, *,
                    batch_pad, hidden_pad, time_block,
                    seq_len, seq_len_pad, out_dtype, prepass_rows):
    """One LSTM layer over the whole (flattened, padded) sequence.

    x_flat: (Tpad*Bp, D_in) bf16.  Returns (out_flat (Tpad*Bp, Hp) out_dtype,
    h_n, c_n) with h_n/c_n of shape (Bp, Hp) f32.
    """
    rows = x_flat.shape[0]
    Bp, Hp, TB = batch_pad, hidden_pad, time_block
    gate_dim = 4 * Hp
    rows_per_chunk = TB * Bp
    n_chunks = rows // rows_per_chunk

    # Non-recurrent pre-pass: all timesteps' input projections at once, with
    # its own (larger) row tiling.
    gx = _input_projection(x_flat, w_ih_t, bias, prepass_rows)

    kernel = functools.partial(_lstm_recurrent_kernel,
                               hidden_pad=Hp, batch_pad=Bp, time_block=TB,
                               seq_len=seq_len, seq_len_pad=seq_len_pad)

    out_bytes = jnp.dtype(out_dtype).itemsize
    vmem = _vmem_limit(
        2 * _block_bytes((rows_per_chunk, gate_dim), 2)         # gx (bf16, dbl)
        + 2 * _block_bytes((rows_per_chunk, Hp), out_bytes)     # out (dbl)
        + 1 * _block_bytes((Hp, gate_dim), 2)                   # W_hh scratch
        + 2 * _block_bytes((Bp, Hp), 4)                         # hn/cn blocks
        + 2 * _block_bytes((Bp, Hp), 4)                         # h/c carries
    )

    out, h_n, c_n = pl.pallas_call(
        kernel,
        out_shape=(
            jax.ShapeDtypeStruct((rows, Hp), out_dtype),
            jax.ShapeDtypeStruct((Bp, Hp), jnp.float32),
            jax.ShapeDtypeStruct((Bp, Hp), jnp.float32),
        ),
        grid_spec=pltpu.PrefetchScalarGridSpec(
            num_scalar_prefetch=0,
            grid=(n_chunks,),
            in_specs=[
                pl.BlockSpec((rows_per_chunk, gate_dim), lambda i: (i, 0)),  # gx
                pl.BlockSpec(memory_space=pl.ANY),       # W_hh^T (stays in HBM)
            ],
            out_specs=[
                pl.BlockSpec((rows_per_chunk, Hp), lambda i: (i, 0)),        # out
                pl.BlockSpec((Bp, Hp), lambda i: (0, 0)),                    # h_n
                pl.BlockSpec((Bp, Hp), lambda i: (0, 0)),                    # c_n
            ],
            scratch_shapes=[
                pltpu.VMEM((Hp, gate_dim), jnp.bfloat16),  # resident W_hh^T
                pltpu.VMEM((Bp, Hp), jnp.float32),         # h carry
                pltpu.VMEM((Bp, Hp), jnp.float32),         # c carry
            ],
        ),
        compiler_params=pltpu.CompilerParams(
            dimension_semantics=("arbitrary",),      # time recurrence is serial
            vmem_limit_bytes=vmem),
    )(gx, w_hh_t)
    return out, h_n, c_n


def _prep_layer_params(w_ih, w_hh, b_ih, b_hh, d_in_pad, hidden_pad):
    """PyTorch-layout params -> padded, transposed, bf16 MXU-friendly tensors.

    w_ih: (4H, D_in), w_hh: (4H, H), b_*: (4H,), gate order i,f,g,o.
    Each gate block is zero-padded from H to Hp so gate slices are
    lane-aligned; padded hidden units provably stay exactly zero.
    """
    H = w_hh.shape[1]
    D_in = w_ih.shape[1]
    Hp = hidden_pad

    def pad_gate_out(w):                       # (4H, K) -> (4Hp, K)
        K = w.shape[1]
        w = w.reshape(4, H, K)
        w = jnp.pad(w, ((0, 0), (0, Hp - H), (0, 0)))
        return w.reshape(4 * Hp, K)

    w_ih_p = pad_gate_out(w_ih)                                  # (4Hp, D_in)
    w_ih_p = jnp.pad(w_ih_p, ((0, 0), (0, d_in_pad - D_in)))     # pad in-dim
    w_hh_p = pad_gate_out(w_hh)                                  # (4Hp, H)
    w_hh_p = jnp.pad(w_hh_p, ((0, 0), (0, Hp - H)))              # pad in-h dim

    b = (b_ih + b_hh).reshape(4, H)
    b = jnp.pad(b, ((0, 0), (0, Hp - H))).reshape(1, 4 * Hp)

    return (jnp.transpose(w_ih_p).astype(jnp.bfloat16),          # (d_in_pad, 4Hp)
            jnp.transpose(w_hh_p).astype(jnp.bfloat16),          # (Hp, 4Hp)
            b.astype(jnp.float32))                               # (1, 4Hp)


class LSTMEncoderPallas:
    """JAX/Pallas equivalent of the PyTorch lstm_encoder module."""

    def __init__(self, input_size, hidden_size, num_layers=2, key=None,
                 max_time_block=32):
        self.input_size = input_size
        self.hidden_size = hidden_size
        self.num_layers = num_layers
        self.max_time_block = max_time_block
        self.hidden_pad = _round_up(hidden_size, 128)
        if key is None:
            key = jax.random.PRNGKey(0)

        # Deterministic init matching PyTorch's U(-1/sqrt(H), 1/sqrt(H)).
        bound = 1.0 / (hidden_size ** 0.5)
        self.params = []         # raw PyTorch-layout f32 params (for reference)
        self.kernel_params = []  # padded / transposed / bf16 kernel params
        for layer in range(num_layers):
            d_in = input_size if layer == 0 else hidden_size
            key, k1, k2, k3, k4 = jax.random.split(key, 5)
            w_ih = jax.random.uniform(k1, (4 * hidden_size, d_in),
                                      jnp.float32, -bound, bound)
            w_hh = jax.random.uniform(k2, (4 * hidden_size, hidden_size),
                                      jnp.float32, -bound, bound)
            b_ih = jax.random.uniform(k3, (4 * hidden_size,),
                                      jnp.float32, -bound, bound)
            b_hh = jax.random.uniform(k4, (4 * hidden_size,),
                                      jnp.float32, -bound, bound)
            self.params.append((w_ih, w_hh, b_ih, b_hh))
            # Layer > 0 consumes the previous layer's padded output (Hp cols),
            # so its input dim is padded too (extra rows are zero => exact).
            d_in_pad = d_in if layer == 0 else self.hidden_pad
            self.kernel_params.append(
                _prep_layer_params(w_ih, w_hh, b_ih, b_hh,
                                   d_in_pad, self.hidden_pad))

    def __call__(self, x):
        """x: (T, B, input_size) -> (lstm_out, (h_n, c_n))."""
        T, B = x.shape[0], x.shape[1]
        H, Hp = self.hidden_size, self.hidden_pad
        x = x.reshape(T, B, self.input_size).astype(jnp.float32)  # mirrors .view

        Bp = _round_up(B, 8)
        # Uniform time chunks: pad T up to a multiple of TB (padded timesteps
        # are masked inside the recurrent kernel, so h_n/c_n stay exact).
        TB = min(self.max_time_block, T)
        Tpad = _round_up(T, TB)

        # Pad time and batch; padded entries are zero-filled and either masked
        # (time) or sliced away (batch rows are independent in an LSTM).
        xp = jnp.pad(x, ((0, Tpad - T), (0, Bp - B), (0, 0)))
        # Layer-0 input in bf16: the pre-pass matmul consumes bf16 anyway and
        # it is DMA-bound, so this halves its x stream.
        layer_in = xp.reshape(Tpad * Bp, self.input_size).astype(jnp.bfloat16)

        # Decoupled (larger) pre-pass row tile, still dividing Tpad*Bp exactly.
        prepass_rows = Bp * _largest_divisor_leq(Tpad, max(1, 1024 // Bp))

        h_list, c_list = [], []
        for layer, (w_ih_t, w_hh_t, bias) in enumerate(self.kernel_params):
            is_last = layer == self.num_layers - 1
            layer_in, h_n, c_n = _run_lstm_layer(
                layer_in, w_ih_t, w_hh_t, bias,
                batch_pad=Bp, hidden_pad=Hp, time_block=TB,
                seq_len=T, seq_len_pad=Tpad,
                out_dtype=jnp.float32 if is_last else jnp.bfloat16,
                prepass_rows=prepass_rows)
            h_list.append(h_n[:B, :H])
            c_list.append(c_n[:B, :H])

        lstm_out = layer_in.reshape(Tpad, Bp, Hp)[:T, :B, :H]
        h_n = jnp.stack(h_list, axis=0)   # (num_layers, B, H)
        c_n = jnp.stack(c_list, axis=0)   # (num_layers, B, H)
        return lstm_out, (h_n, c_n)


def _reference_lstm(x, params, hidden_size):
    """Pure-JAX reference (lax.scan) emulating the kernel's bf16 numerics."""
    def mm(a, w_t):
        return jnp.dot(a.astype(jnp.bfloat16), w_t.astype(jnp.bfloat16),
                       preferred_element_type=jnp.float32)

    def layer(x, w_ih, w_hh, b_ih, b_hh):
        B = x.shape[1]
        Hs = hidden_size
        w_ih_t = w_ih.T
        w_hh_t = w_hh.T
        b = (b_ih + b_hh).astype(jnp.float32)

        def step(carry, x_t):
            h, c = carry
            # gx is stored in bf16 by the kernel's pre-pass; emulate the round.
            gx = (mm(x_t, w_ih_t) + b).astype(jnp.bfloat16).astype(jnp.float32)
            gates = gx + mm(h, w_hh_t)
            i = jax.nn.sigmoid(gates[:, 0 * Hs:1 * Hs])
            f = jax.nn.sigmoid(gates[:, 1 * Hs:2 * Hs])
            g = jnp.tanh(gates[:, 2 * Hs:3 * Hs])
            o = jax.nn.sigmoid(gates[:, 3 * Hs:4 * Hs])
            c = f * c + i * g
            h = o * jnp.tanh(c)
            return (h, c), h

        h0 = jnp.zeros((B, Hs), jnp.float32)
        c0 = jnp.zeros((B, Hs), jnp.float32)
        (h_n, c_n), out = jax.lax.scan(step, (h0, c0), x)
        return out, h_n, c_n

    h_list, c_list = [], []
    layer_in = x
    for (w_ih, w_hh, b_ih, b_hh) in params:
        layer_in, h_n, c_n = layer(layer_in, w_ih, w_hh, b_ih, b_hh)
        h_list.append(h_n)
        c_list.append(c_n)
    return layer_in, (jnp.stack(h_list), jnp.stack(c_list))


if __name__ == "__main__":
    SEQ, BATCH, INPUT_SIZE, HIDDEN = 8, 4, 16, 32

    key = jax.random.PRNGKey(0)
    k_x, k_w = jax.random.split(key)
    x = jax.random.normal(k_x, (SEQ, BATCH, INPUT_SIZE), jnp.float32)

    model = LSTMEncoderPallas(INPUT_SIZE, HIDDEN, num_layers=2, key=k_w)

    lstm_out, (h_n, c_n) = model(x)
    jax.block_until_ready((lstm_out, h_n, c_n))

    # Sanity check against a pure-JAX lax.scan reference (bf16-emulated numerics).
    ref_out, (ref_h, ref_c) = _reference_lstm(x, model.params, HIDDEN)
    assert lstm_out.shape == (SEQ, BATCH, HIDDEN)
    assert h_n.shape == (2, BATCH, HIDDEN) and c_n.shape == (2, BATCH, HIDDEN)
    assert jnp.allclose(lstm_out, ref_out, atol=5e-3)
    assert jnp.allclose(h_n, ref_h, atol=5e-3)
    assert jnp.allclose(c_n, ref_c, atol=5e-3)

    print("KERNEL_OK")
</pallas_src>

<mosaic_0001>
module attributes {stable_mosaic.version = 11 : i64} {
  func.func @_input_proj_kernel(%arg0: i32, %arg1: memref<64x16xbf16, #tpu.memory_space<vmem>>, %arg2: memref<16x512xbf16, #tpu.memory_space<vmem>>, %arg3: memref<1x512xf32, #tpu.memory_space<vmem>>, %arg4: memref<64x512xbf16, #tpu.memory_space<vmem>>) attributes {dimension_semantics = [#tpu.dimension_semantics<parallel>], iteration_bounds = array<i64: 1>, scalar_prefetch = 0 : i64, scratch_operands = 0 : i64, tpu.core_type = #tpu.core_type<tc>, window_params = [{transform_indices = @transform_0, window_bounds = array<i64: 64, 16>}, {pipeline_mode = #tpu.pipeline_mode<synchronous>, transform_indices = @transform_1, window_bounds = array<i64: 16, 512>}, {pipeline_mode = #tpu.pipeline_mode<synchronous>, transform_indices = @transform_2, window_bounds = array<i64: 1, 512>}, {transform_indices = @transform_3, window_bounds = array<i64: 64, 512>}]} {
    %c0 = arith.constant 0 : index
    %c0_0 = arith.constant 0 : index
    %0 = vector.load %arg1[%c0, %c0_0] : memref<64x16xbf16, #tpu.memory_space<vmem>>, vector<64x16xbf16>
    %c0_1 = arith.constant 0 : index
    %c0_2 = arith.constant 0 : index
    %1 = vector.load %arg2[%c0_1, %c0_2] : memref<16x512xbf16, #tpu.memory_space<vmem>>, vector<16x512xbf16>
    %cst = arith.constant dense<0.000000e+00> : vector<64x512xf32>
    %2 = tpu.matmul %0, %1, %cst {dimension_numbers = #tpu.dot_dimension_numbers<[1], [0], [0], [1], [0, 0, 1, 1], [], []>} : vector<64x16xbf16>, vector<16x512xbf16>, vector<64x512xf32> -> vector<64x512xf32>
    %c0_3 = arith.constant 0 : index
    %c0_4 = arith.constant 0 : index
    %3 = vector.load %arg3[%c0_3, %c0_4] : memref<1x512xf32, #tpu.memory_space<vmem>>, vector<1x512xf32>
    %4 = vector.broadcast %3 : vector<1x512xf32> to vector<64x512xf32>
    %5 = arith.addf %2, %4 : vector<64x512xf32>
    %6 = arith.truncf %5 : vector<64x512xf32> to vector<64x512xbf16>
    %c0_5 = arith.constant 0 : index
    %c0_6 = arith.constant 0 : index
    %7 = vector.load %arg4[%c0_5, %c0_6] : memref<64x512xbf16, #tpu.memory_space<vmem>>, vector<64x512xbf16>
    tpu.vector_store %arg4[%c0_5, %c0_6], %6 {strides = array<i32>} : memref<64x512xbf16, #tpu.memory_space<vmem>>, vector<64x512xbf16>,
    return
  }
  func.func @transform_0(%arg0: i32) -> (i32, i32) {
    %c0_i32 = arith.constant 0 : i32
    %c0_i32_0 = arith.constant 0 : i32
    return %arg0, %c0_i32 : i32, i32
  }
  func.func @transform_1(%arg0: i32) -> (i32, i32) {
    %c0_i32 = arith.constant 0 : i32
    %c0_i32_0 = arith.constant 0 : i32
    %c0_i32_1 = arith.constant 0 : i32
    return %c0_i32, %c0_i32_0 : i32, i32
  }
  func.func @transform_2(%arg0: i32) -> (i32, i32) {
    %c0_i32 = arith.constant 0 : i32
    %c0_i32_0 = arith.constant 0 : i32
    %c0_i32_1 = arith.constant 0 : i32
    return %c0_i32, %c0_i32_0 : i32, i32
  }
  func.func @transform_3(%arg0: i32) -> (i32, i32) {
    %c0_i32 = arith.constant 0 : i32
    %c0_i32_0 = arith.constant 0 : i32
    return %arg0, %c0_i32 : i32, i32
  }
}

</mosaic_0001>

<llo_original>
// kernel: tpu_custom_call.1
$region0: #{tpu_custom_call.1}
  #allocation0 [shape = 'u32[]', space=smem, size = 0x4, offset = 0x4, fixed_abs, tag = 'smem constant byte address 0x4 - core index']
  #allocation1 [shape = 'u32[144,128]{1,0:T(1,128)}', space=vmem, size = 0x12000, scoped, tag = 'internal scratch']
  %s0 = inlined_call_operand.vmem [shape: bf16[64,16], index: 0, kind: input, shape index: {}]
  %s1 = inlined_call_operand.vmem [shape: bf16[16,512], index: 1, kind: input, shape index: {}]
  %s2 = inlined_call_operand.vmem [shape: f32[1,512], index: 2, kind: input, shape index: {}]
  %s3 = inlined_call_operand.hbm [shape: bf16[64,512], index: 3, kind: output, shape index: {}]
  %s4 = sld [smem:[#allocation0]]
  $region22: #{tpu_custom_call.1} parent=0
    _
  %s6 = ssub.s32 1, %s4
  %s7 = scalar_select 0, %s6, %s4
  $region1: #{tpu_custom_call.1} parent=0
    #allocation2 [shape = 'u8[65536]{0}', space=vmem, size = 0x10000, scoped, tag = 'output window, operand 0, single buffered']
    #allocation3 [shape = 's32[1]{0}', space=sflag, size = 0x4, scoped, tag = 'scoped memory for tpu_custom_call.1']
    %8 = vsyncpa [#allocation3], 0
    // Predicated region
    $region2: #{tpu_custom_call.1} parent=1 // pred_check
      _
    $region3: #{tpu_custom_call.1} parent=1 // pred_check_branch
      %10 = sbr.rel (0) target = $region5
    $region4: #{tpu_custom_call.1} parent=1 // pred_region
      _
    $region5: #{tpu_custom_call.1} parent=1 // pred_fallthru
      _
    // Predicated region
    $region6: #{tpu_custom_call.1} parent=1 // pred_check
      _
    $region7: #{tpu_custom_call.1} parent=1 // pred_check_branch
      %12 = sbr.rel (0) target = $region9
    $region8: #{tpu_custom_call.1} parent=1 // pred_region
      _
    $region9: #{tpu_custom_call.1} parent=1 // pred_fallthru
      _
    // Predicated region
    $region10: #{tpu_custom_call.1} parent=1 // pred_check
      _
    $region11: #{tpu_custom_call.1} parent=1 // pred_check_branch
      %14 = sbr.rel (0) target = $region13
    $region12: #{tpu_custom_call.1} parent=1 // pred_region
      _
    $region13: #{tpu_custom_call.1} parent=1 // pred_fallthru
      _
    %v16 = vld [vmem:[%s0] sm:$0xf]
    %v17 = vld [vmem:[%s0 + $0x4] sm:$0xf]
    %v18 = vld [vmem:[%s0 + $0x8] sm:$0xf]
    %v19 = vld [vmem:[%s0 + $0xc] sm:$0xf]
    %v20 = vld [vmem:[%s0 + $0x10] sm:$0xf]
    %v21 = vld [vmem:[%s0 + $0x14] sm:$0xf]
    %v22 = vld [vmem:[%s0 + $0x18] sm:$0xf]
    %v23 = vld [vmem:[%s0 + $0x1c] sm:$0xf]
    %v24 = vld [vmem:[%s1] sm:$0xff]
    %v25 = vld [vmem:[%s1 + $0x8] sm:$0xff]
    %v26 = vld [vmem:[%s1 + $0x10] sm:$0xff]
    %v27 = vld [vmem:[%s1 + $0x18] sm:$0xff]
    %v28 = vld [vmem:[%s2] sm:$0xf]
    %v30 = vlaneseq
    %v31 = vshrl.u32 %v30, 7
    %v32 = vsub.s32 0, %v31
    %v33 = vrot.slane %v28, %v32
    %v34 = vlaneseq
    %v35 = vshrl.u32 %v34, 7
    %v36 = vsub.s32 1, %v35
    %v37 = vrot.slane %v28, %v36
    %v38 = vlaneseq
    %v39 = vshrl.u32 %v38, 7
    %v40 = vsub.s32 2, %v39
    %v41 = vrot.slane %v28, %v40
    %v42 = vlaneseq
    %v43 = vshrl.u32 %v42, 7
    %v44 = vsub.s32 3, %v43
    %v45 = vrot.slane %v28, %v44
    %v58 = vunpack.c.l.b16 %v16
    %v59 = vunpack.c.l.b16 %v17
    %v60 = vunpack.c.l.b16 %v18
    %v61 = vunpack.c.l.b16 %v19
    %v62 = vunpack.c.l.b16 %v20
    %v63 = vunpack.c.l.b16 %v21
    %v64 = vunpack.c.l.b16 %v22
    %v65 = vunpack.c.l.b16 %v23
    %v66 = vpack.c.b16 %v59, %v58
    %v67 = vpack.c.b16 %v61, %v60
    %v68 = vpack.c.b16 %v63, %v62
    %v69 = vpack.c.b16 %v65, %v64
    %v74 = vunpack.c.l.b16 %v24
    %v75 = vunpack.c.h.b16 %v24
    %v76 = vunpack.c.l.b16 %v25
    %v77 = vunpack.c.h.b16 %v25
    %v78 = vunpack.c.l.b16 %v26
    %v79 = vunpack.c.h.b16 %v26
    %v80 = vunpack.c.l.b16 %v27
    %v81 = vunpack.c.h.b16 %v27
    %v82 = vpack.c.b16 %v78, %v74
    %v83 = vpack.c.b16 %v79, %v75
    %v84 = vpack.c.b16 %v80, %v76
    %v85 = vpack.c.b16 %v81, %v77
    %vm90 = vcmask 130048
    %v92 = vsel %vm90, %v66, 0
    %v95 = vsel %vm90, %v67, 0
    %v98 = vsel %vm90, %v68, 0
    %v101 = vsel %vm90, %v69, 0
    %103 = vmatprep.subr.bf16.mxu0 0
    %104 = vmatpush1.bf16.msra.mxu0 0
    %105 = vmatprep.subr.bf16.mxu0 0
    %106 = vmatpush1.bf16.msra.mxu0 0
    %107 = vmatprep.subr.bf16.mxu0 0
    %108 = vmatpush1.bf16.msra.mxu0 0
    %109 = vmatprep.subr.bf16.mxu0 0
    %110 = vmatpush1.bf16.msra.mxu0 0
    %111 = vmatprep.subr.bf16.mxu0 0
    %112 = vmatpush1.bf16.msra.mxu0 0
    %113 = vmatprep.subr.bf16.mxu0 0
    %114 = vmatpush1.bf16.msra.mxu0 0
    %115 = vmatprep.subr.bf16.mxu0 0
    %116 = vmatpush1.bf16.msra.mxu0 0
    %117 = vmatprep.subr.bf16.mxu0 %v83
    %118 = vmatpush1.bf16.msra.mxu0 %v82
    %119 = vmatprep.subr.bf16.mxu0 0
    %120 = vmatpush2.bf16.msra.mxu0 0
    %121 = vmatprep.subr.bf16.mxu0 0
    %122 = vmatpush2.bf16.msra.mxu0 0
    %123 = vmatprep.subr.bf16.mxu0 0
    %124 = vmatpush2.bf16.msra.mxu0 0
    %125 = vmatprep.subr.bf16.mxu0 0
    %126 = vmatpush2.bf16.msra.mxu0 0
    %127 = vmatprep.subr.bf16.mxu0 0
    %128 = vmatpush2.bf16.msra.mxu0 0
    %129 = vmatprep.subr.bf16.mxu0 0
    %130 = vmatpush2.bf16.msra.mxu0 0
    %131 = vmatprep.subr.bf16.mxu0 0
    %132 = vmatpush2.bf16.msra.mxu0 0
    %133 = vmatprep.subr.bf16.mxu0 0
    %134 = vmatpush2.bf16.msra.mxu0 0
    %135 = vmatprep.mubr.bf16.mxu0 0
    %136 = vmatmul.mubr.bf16.gmra.mxu0 %v92
    %v137 = vpop.f32.mrf.mxu0
    %v138 = vadd.f32 %v33, %v137
    %v139 = vpop.f32.mrf.mxu0
    %v140 = vadd.f32 %v37, %v139
    %v141 = vpop.f32.mrf.mxu0
    %v142 = vadd.f32 %v33, %v141
    %v143 = vpop.f32.mrf.mxu0
    %v144 = vadd.f32 %v37, %v143
    %145 = vmatprep.mubr.bf16.mxu0 0
    %146 = vmatmul.mubr.bf16.gmra.mxu0 %v95
    %v147 = vpop.f32.mrf.mxu0
    %v148 = vadd.f32 %v33, %v147
    %v149 = vpop.f32.mrf.mxu0
    %v150 = vadd.f32 %v37, %v149
    %v151 = vpop.f32.mrf.mxu0
    %v152 = vadd.f32 %v33, %v151
    %v153 = vpop.f32.mrf.mxu0
    %v154 = vadd.f32 %v37, %v153
    %155 = vmatprep.mubr.bf16.mxu0 0
    %156 = vmatmul.mubr.bf16.gmra.mxu0 %v98
    %v157 = vpop.f32.mrf.mxu0
    %v158 = vadd.f32 %v33, %v157
    %v159 = vpop.f32.mrf.mxu0
    %v160 = vadd.f32 %v37, %v159
    %v161 = vpop.f32.mrf.mxu0
    %v162 = vadd.f32 %v33, %v161
    %v163 = vpop.f32.mrf.mxu0
    %v164 = vadd.f32 %v37, %v163
    %165 = vmatprep.mubr.bf16.mxu0 0
    %166 = vmatmul.mubr.bf16.gmra.mxu0 %v101
    %v167 = vpop.f32.mrf.mxu0
    %v168 = vadd.f32 %v33, %v167
    %v169 = vpop.f32.mrf.mxu0
    %v170 = vadd.f32 %v37, %v169
    %v171 = vpop.f32.mrf.mxu0
    %v172 = vadd.f32 %v33, %v171
    %v173 = vpop.f32.mrf.mxu0
    %v174 = vadd.f32 %v37, %v173
    %175 = vdwg.mxu0
    %176 = vmatprep.subr.bf16.mxu0 0
    %177 = vmatpush1.bf16.msra.mxu0 0
    %178 = vmatprep.subr.bf16.mxu0 0
    %179 = vmatpush1.bf16.msra.mxu0 0
    %180 = vmatprep.subr.bf16.mxu0 0
    %181 = vmatpush1.bf16.msra.mxu0 0
    %182 = vmatprep.subr.bf16.mxu0 0
    %183 = vmatpush1.bf16.msra.mxu0 0
    %184 = vmatprep.subr.bf16.mxu0 0
    %185 = vmatpush1.bf16.msra.mxu0 0
    %186 = vmatprep.subr.bf16.mxu0 0
    %187 = vmatpush1.bf16.msra.mxu0 0
    %188 = vmatprep.subr.bf16.mxu0 0
    %189 = vmatpush1.bf16.msra.mxu0 0
    %190 = vmatprep.subr.bf16.mxu0 %v85
    %191 = vmatpush1.bf16.msra.mxu0 %v84
    %192 = vmatprep.subr.bf16.mxu0 0
    %193 = vmatpush2.bf16.msra.mxu0 0
    %194 = vmatprep.subr.bf16.mxu0 0
    %195 = vmatpush2.bf16.msra.mxu0 0
    %196 = vmatprep.subr.bf16.mxu0 0
    %197 = vmatpush2.bf16.msra.mxu0 0
    %198 = vmatprep.subr.bf16.mxu0 0
    %199 = vmatpush2.bf16.msra.mxu0 0
    %200 = vmatprep.subr.bf16.mxu0 0
    %201 = vmatpush2.bf16.msra.mxu0 0
    %202 = vmatprep.subr.bf16.mxu0 0
    %203 = vmatpush2.bf16.msra.mxu0 0
    %204 = vmatprep.subr.bf16.mxu0 0
    %205 = vmatpush2.bf16.msra.mxu0 0
    %206 = vmatprep.subr.bf16.mxu0 0
    %207 = vmatpush2.bf16.msra.mxu0 0
    %208 = vmatprep.mubr.bf16.mxu0 0
    %209 = vmatmul.mubr.bf16.gmra.mxu0 %v92
    %v210 = vpop.f32.mrf.mxu0
    %v211 = vadd.f32 %v41, %v210
    %v212 = vpop.f32.mrf.mxu0
    %v213 = vadd.f32 %v45, %v212
    %v214 = vpop.f32.mrf.mxu0
    %v215 = vadd.f32 %v41, %v214
    %v216 = vpop.f32.mrf.mxu0
    %v217 = vadd.f32 %v45, %v216
    %218 = vmatprep.mubr.bf16.mxu0 0
    %219 = vmatmul.mubr.bf16.gmra.mxu0 %v95
    %v220 = vpop.f32.mrf.mxu0
    %v221 = vadd.f32 %v41, %v220
    %v222 = vpop.f32.mrf.mxu0
    %v223 = vadd.f32 %v45, %v222
    %v224 = vpop.f32.mrf.mxu0
    %v225 = vadd.f32 %v41, %v224
    %v226 = vpop.f32.mrf.mxu0
    %v227 = vadd.f32 %v45, %v226
    %228 = vmatprep.mubr.bf16.mxu0 0
    %229 = vmatmul.mubr.bf16.gmra.mxu0 %v98
    %v230 = vpop.f32.mrf.mxu0
    %v231 = vadd.f32 %v41, %v230
    %v232 = vpop.f32.mrf.mxu0
    %v233 = vadd.f32 %v45, %v232
    %v234 = vpop.f32.mrf.mxu0
    %v235 = vadd.f32 %v41, %v234
    %v236 = vpop.f32.mrf.mxu0
    %v237 = vadd.f32 %v45, %v236
    %238 = vmatprep.mubr.bf16.mxu0 0
    %239 = vmatmul.mubr.bf16.gmra.mxu0 %v101
    %v240 = vpop.f32.mrf.mxu0
    %v241 = vadd.f32 %v41, %v240
    %v242 = vpop.f32.mrf.mxu0
    %v243 = vadd.f32 %v45, %v242
    %v244 = vpop.f32.mrf.mxu0
    %v245 = vadd.f32 %v41, %v244
    %v246 = vpop.f32.mrf.mxu0
    %v247 = vadd.f32 %v45, %v246
    %248 = vdwg.mxu0
    %v249 = vpack.c.bf16 %v142, %v138
    %v250 = vpack.c.bf16 %v144, %v140
    %v251 = vpack.c.bf16 %v215, %v211
    %v252 = vpack.c.bf16 %v217, %v213
    %v253 = vpack.c.bf16 %v152, %v148
    %v254 = vpack.c.bf16 %v154, %v150
    %v255 = vpack.c.bf16 %v225, %v221
    %v256 = vpack.c.bf16 %v227, %v223
    %v257 = vpack.c.bf16 %v162, %v158
    %v258 = vpack.c.bf16 %v164, %v160
    %v259 = vpack.c.bf16 %v235, %v231
    %v260 = vpack.c.bf16 %v237, %v233
    %v261 = vpack.c.bf16 %v172, %v168
    %v262 = vpack.c.bf16 %v174, %v170
    %v263 = vpack.c.bf16 %v245, %v241
    %v264 = vpack.c.bf16 %v247, %v243
    %v281 = vunpack.c.l.b16 %v249
    %v282 = vunpack.c.l.b16 %v250
    %v283 = vunpack.c.l.b16 %v251
    %v284 = vunpack.c.l.b16 %v252
    %v285 = vunpack.c.h.b16 %v249
    %v286 = vunpack.c.h.b16 %v250
    %v287 = vunpack.c.h.b16 %v251
    %v288 = vunpack.c.h.b16 %v252
    %v289 = vunpack.c.l.b16 %v253
    %v290 = vunpack.c.l.b16 %v254
    %v291 = vunpack.c.l.b16 %v255
    %v292 = vunpack.c.l.b16 %v256
    %v293 = vunpack.c.h.b16 %v253
    %v294 = vunpack.c.h.b16 %v254
    %v295 = vunpack.c.h.b16 %v255
    %v296 = vunpack.c.h.b16 %v256
    %v297 = vunpack.c.l.b16 %v257
    %v298 = vunpack.c.l.b16 %v258
    %v299 = vunpack.c.l.b16 %v259
    %v300 = vunpack.c.l.b16 %v260
    %v301 = vunpack.c.h.b16 %v257
    %v302 = vunpack.c.h.b16 %v258
    %v303 = vunpack.c.h.b16 %v259
    %v304 = vunpack.c.h.b16 %v260
    %v305 = vunpack.c.l.b16 %v261
    %v306 = vunpack.c.l.b16 %v262
    %v307 = vunpack.c.l.b16 %v263
    %v308 = vunpack.c.l.b16 %v264
    %v309 = vunpack.c.h.b16 %v261
    %v310 = vunpack.c.h.b16 %v262
    %v311 = vunpack.c.h.b16 %v263
    %v312 = vunpack.c.h.b16 %v264
    %v313 = vpack.c.b16 %v282, %v281
    %v314 = vpack.c.b16 %v284, %v283
    %v315 = vpack.c.b16 %v286, %v285
    %v316 = vpack.c.b16 %v288, %v287
    %v317 = vpack.c.b16 %v290, %v289
    %v318 = vpack.c.b16 %v292, %v291
    %v319 = vpack.c.b16 %v294, %v293
    %v320 = vpack.c.b16 %v296, %v295
    %v321 = vpack.c.b16 %v298, %v297
    %v322 = vpack.c.b16 %v300, %v299
    %v323 = vpack.c.b16 %v302, %v301
    %v324 = vpack.c.b16 %v304, %v303
    %v325 = vpack.c.b16 %v306, %v305
    %v326 = vpack.c.b16 %v308, %v307
    %v327 = vpack.c.b16 %v310, %v309
    %v328 = vpack.c.b16 %v312, %v311
    %345 = vst [vmem:[#allocation2] sm:$0xff] %v313
    %346 = vst [vmem:[#allocation2 + $0x8] sm:$0xff] %v314
    %347 = vst [vmem:[#allocation2 + $0x10] sm:$0xff] %v315
    %348 = vst [vmem:[#allocation2 + $0x18] sm:$0xff] %v316
    %349 = vst [vmem:[#allocation2 + $0x20] sm:$0xff] %v317
    %350 = vst [vmem:[#allocation2 + $0x28] sm:$0xff] %v318
    %351 = vst [vmem:[#allocation2 + $0x30] sm:$0xff] %v319
    %352 = vst [vmem:[#allocation2 + $0x38] sm:$0xff] %v320
    %353 = vst [vmem:[#allocation2 + $0x40] sm:$0xff] %v321
    %354 = vst [vmem:[#allocation2 + $0x48] sm:$0xff] %v322
    %355 = vst [vmem:[#allocation2 + $0x50] sm:$0xff] %v323
    %356 = vst [vmem:[#allocation2 + $0x58] sm:$0xff] %v324
    %357 = vst [vmem:[#allocation2 + $0x60] sm:$0xff] %v325
    %358 = vst [vmem:[#allocation2 + $0x68] sm:$0xff] %v326
    %359 = vst [vmem:[#allocation2 + $0x70] sm:$0xff] %v327
    %360 = vst [vmem:[#allocation2 + $0x78] sm:$0xff] %v328
    // Predicated region
    $region14: #{tpu_custom_call.1} parent=1 // pred_check
      _
    $region15: #{tpu_custom_call.1} parent=1 // pred_check_branch
      %362 = sbr.rel (0) target = $region17
    $region16: #{tpu_custom_call.1} parent=1 // pred_region
      %s364 = ssub.s32 2048, 2048
      %365 = vsyncadd [#allocation3], %s364
      %s366 = sshll.u32 [#allocation2], 4
      %s367 = int_to_ptr.vmem [resolvable:$true] %s366
      %372 = dma.vmem_to_hbm [thread:$0]  %s367, 2048, %s3, [#allocation3], 256, 256, 16
    $region17: #{tpu_custom_call.1} parent=1 // pred_fallthru
      _
    // Predicated region
    $region18: #{tpu_custom_call.1} parent=1 // pred_check
      _
    $region19: #{tpu_custom_call.1} parent=1 // pred_check_branch
      %374 = sbr.rel (0) target = $region21
    $region20: #{tpu_custom_call.1} parent=1 // pred_region
      %375 = dma.done [#allocation3], 2048
    $region21: #{tpu_custom_call.1} parent=1 // pred_fallthru
      _
    %376 = vsyncpa [#allocation3], 1

</llo_original>
